<compile_context>
chip_gen: v7x
topology: tpu7x:2x2x1
jax: 0.10.0
libtpu: 0.0.40
codegen_flags: <defaults>
</compile_context>

<pallas_src>
import numpy as np
import jax
import jax.numpy as jnp
from jax.experimental import pallas as pl
from jax.experimental.pallas import tpu as pltpu

LANE = 128


# ----------------------------------------------------------------------------
# helpers (plain JAX / numpy glue)
# ----------------------------------------------------------------------------
def _bilinear_matrix(n_in, n_out):
    """1-D interpolation matrix for align_corners=True bilinear resize."""
    m = np.zeros((n_out, n_in), dtype=np.float32)
    if n_in == 1:
        m[:, 0] = 1.0
        return m
    scale = (n_in - 1) / (n_out - 1)
    for i in range(n_out):
        src = i * scale
        i0 = min(int(np.floor(src)), n_in - 1)
        i1 = min(i0 + 1, n_in - 1)
        w1 = src - i0
        m[i, i0] += 1.0 - w1
        m[i, i1] += w1
    return m


def _fold_bn(bias, gamma, beta, mean, var, eps=1e-5):
    """Fold Conv bias + eval-mode BatchNorm into per-channel scale/shift."""
    scale = gamma / jnp.sqrt(var + eps)
    shift = beta + (bias - mean) * scale
    return scale, shift


def _round_up(x, m):
    return (x + m - 1) // m * m


def _pick_row_tile(h, w):
    """Smallest row tile giving >=128 matmul rows per grid step (divides H)."""
    for th in (1, 2, 4, 8, 16, 32, 64):
        if h % th == 0 and th * w >= 128:
            return th
    return h


# ----------------------------------------------------------------------------
# Pallas kernels
# ----------------------------------------------------------------------------
def _matmul_rows_kernel(m_ref, x_ref, o_ref):
    # m_ref: [R_out, R_in]   x_ref: [1, R_in, N]   o_ref: [1, R_out, N]
    o_ref[0] = jnp.dot(m_ref[...], x_ref[0], preferred_element_type=jnp.float32)


def _make_conv_kernel(n_in, cs, th, w_cols):
    """Fused 3x3 conv (+BN scale/shift +ReLU) over a row tile.

    Inputs are padded NHWC images; the 3x3 taps of each input are gathered by
    shifted window reads and packed (at interleaved channel offsets matching
    torch.cat channel order) into one [th*W, 9*sum(C)] patch, then a single
    MXU matmul against the [9*sum(C), Cout] weight.
    """
    ctot = sum(cs)
    offs, o = [], 0
    for c in cs:
        offs.append(o)
        o += c

    def kernel(*refs):
        x_refs = refs[:n_in]
        w_ref, scale_ref, shift_ref, o_ref, patch_ref = refs[n_in:]
        r = pl.program_id(1)
        row0 = pl.multiple_of(r * th, th)          # first output row of this tile
        for j in range(n_in):                      # inputs of the fused concat
            cj, oj = cs[j], offs[j]
            for kh in range(3):
                for kw in range(3):
                    k = kh * 3 + kw
                    # shifted window of the padded image: [th, W, cj]
                    tap = x_refs[j][0, pl.ds(row0 + kh, th), kw:kw + w_cols, :]
                    c0 = k * ctot + oj
                    patch_ref[:, c0:c0 + cj] = tap.reshape(th * w_cols, cj)
        y = jnp.dot(patch_ref[...], w_ref[...],
                    preferred_element_type=jnp.float32)       # [th*W, Cout]
        y = jnp.maximum(y * scale_ref[...] + shift_ref[...], 0.0)
        o_ref[0] = y

    return kernel


# ----------------------------------------------------------------------------
# wrappers around pallas_call
# ----------------------------------------------------------------------------
def bilinear_upsample_x2(x_nhwc):
    """Separable align_corners=True bilinear x2 upsample (two matmul kernels)."""
    B, H, W, C = x_nhwc.shape
    H2, W2 = 2 * H, 2 * W
    mh = jnp.asarray(_bilinear_matrix(H, H2))
    mw = jnp.asarray(_bilinear_matrix(W, W2))
    x = x_nhwc.astype(jnp.float32)

    # stage 1: interpolate along H          [B, H, W*C] -> [B, H2, W*C]
    t = pl.pallas_call(
        _matmul_rows_kernel,
        out_shape=jax.ShapeDtypeStruct((B, H2, W * C), jnp.float32),
        grid=(B,),
        in_specs=[pl.BlockSpec((H2, H), lambda b: (0, 0)),
                  pl.BlockSpec((1, H, W * C), lambda b: (b, 0, 0))],
        out_specs=pl.BlockSpec((1, H2, W * C), lambda b: (b, 0, 0)),
        compiler_params=pltpu.CompilerParams(dimension_semantics=("parallel",)),
    )(mh, x.reshape(B, H, W * C))

    # put W on the contraction axis (cheap XLA transpose of a small tensor)
    t = t.reshape(B, H2, W, C).transpose(0, 2, 1, 3).reshape(B, W, H2 * C)

    # stage 2: interpolate along W          [B, W, H2*C] -> [B, W2, H2*C]
    u = pl.pallas_call(
        _matmul_rows_kernel,
        out_shape=jax.ShapeDtypeStruct((B, W2, H2 * C), jnp.float32),
        grid=(B,),
        in_specs=[pl.BlockSpec((W2, W), lambda b: (0, 0)),
                  pl.BlockSpec((1, W, H2 * C), lambda b: (b, 0, 0))],
        out_specs=pl.BlockSpec((1, W2, H2 * C), lambda b: (b, 0, 0)),
        compiler_params=pltpu.CompilerParams(dimension_semantics=("parallel",)),
    )(mw, t)

    return u.reshape(B, W2, H2, C).transpose(0, 2, 1, 3)     # [B, H2, W2, C]


def conv3x3_bn_relu(xs, w_hwio, scale, shift):
    """3x3 'SAME' conv over the (virtual) channel-concat of `xs`, + BN + ReLU.

    xs            : list of NHWC activations (same B,H,W), channels concat order
    w_hwio        : [3, 3, sum(C_in), Cout]
    scale, shift  : [Cout] folded BatchNorm
    returns       : [B, H, W, Cout]
    """
    B, H, W, _ = xs[0].shape
    cs = [int(x.shape[-1]) for x in xs]
    ctot = sum(cs)
    cout = int(w_hwio.shape[-1])
    K = 9 * ctot
    th = _pick_row_tile(H, W)
    n_row = H // th

    # one zero-padded copy per input (halo handled by shifted reads in-kernel)
    xps = [jnp.pad(x.astype(jnp.float32), ((0, 0), (1, 1), (1, 1), (0, 0)))
           for x in xs]
    w2d = w_hwio.reshape(K, cout).astype(jnp.float32)
    scale2 = scale.reshape(1, cout).astype(jnp.float32)
    shift2 = shift.reshape(1, cout).astype(jnp.float32)

    in_specs = (
        [pl.BlockSpec((1, H + 2, W + 2, c), lambda b, r: (b, 0, 0, 0))
         for c in cs]
        + [pl.BlockSpec((K, cout), lambda b, r: (0, 0)),
           pl.BlockSpec((1, cout), lambda b, r: (0, 0)),
           pl.BlockSpec((1, cout), lambda b, r: (0, 0))])

    flops = int(2 * B * H * W * K * cout)
    bytes_accessed = int(4 * (sum(B * (H + 2) * (W + 2) * c for c in cs)
                              + K * cout + B * H * W * cout))

    out = pl.pallas_call(
        _make_conv_kernel(len(xs), cs, th, W),
        out_shape=jax.ShapeDtypeStruct((B, H * W, cout), jnp.float32),
        grid=(B, n_row),
        in_specs=in_specs,
        out_specs=pl.BlockSpec((1, th * W, cout), lambda b, r: (b, r, 0)),
        scratch_shapes=[pltpu.VMEM((th * W, K), jnp.float32)],
        compiler_params=pltpu.CompilerParams(
            dimension_semantics=("parallel", "parallel"),
            vmem_limit_bytes=32 * 1024 * 1024),
        cost_estimate=pl.CostEstimate(flops=flops, transcendentals=0,
                                      bytes_accessed=bytes_accessed),
    )(*xps, w2d, scale2, shift2)
    return out.reshape(B, H, W, cout)


# ----------------------------------------------------------------------------
# parameters (deterministic, in-script)
# ----------------------------------------------------------------------------
def init_up_params(key, in_ch, out_ch):
    ks = jax.random.split(key, 12)

    def conv_w(k, cin, cout):
        bound = 1.0 / np.sqrt(cin * 9)
        return jax.random.uniform(k, (3, 3, cin, cout), jnp.float32, -bound, bound)

    return {
        "w1": conv_w(ks[0], in_ch, out_ch),
        "b1": jax.random.uniform(ks[1], (out_ch,), jnp.float32, -0.1, 0.1),
        "gamma1": 1.0 + 0.1 * jax.random.normal(ks[2], (out_ch,), jnp.float32),
        "beta1": 0.1 * jax.random.normal(ks[3], (out_ch,), jnp.float32),
        "mean1": 0.1 * jax.random.normal(ks[4], (out_ch,), jnp.float32),
        "var1": 1.0 + 0.1 * jax.random.uniform(ks[5], (out_ch,), jnp.float32),
        "w2": conv_w(ks[6], out_ch, out_ch),
        "b2": jax.random.uniform(ks[7], (out_ch,), jnp.float32, -0.1, 0.1),
        "gamma2": 1.0 + 0.1 * jax.random.normal(ks[8], (out_ch,), jnp.float32),
        "beta2": 0.1 * jax.random.normal(ks[9], (out_ch,), jnp.float32),
        "mean2": 0.1 * jax.random.normal(ks[10], (out_ch,), jnp.float32),
        "var2": 1.0 + 0.1 * jax.random.uniform(ks[11], (out_ch,), jnp.float32),
    }


# ----------------------------------------------------------------------------
# Up.forward  (NCHW in, NCHW out — matches PyTorch)
# ----------------------------------------------------------------------------
def up_forward(params, x1_nchw, x2_nchw):
    x1 = jnp.transpose(x1_nchw, (0, 2, 3, 1))          # NCHW -> NHWC
    x2 = jnp.transpose(x2_nchw, (0, 2, 3, 1))
    c2 = x2.shape[-1]

    x1u = bilinear_upsample_x2(x1)                      # Upsample(x2, bilinear, align_corners=True)

    cout = int(params["w1"].shape[-1])
    cp = _round_up(cout, LANE)                          # lane-dense output channels
    pad_o = cp - cout

    # conv1 + bn1 + relu  (torch.cat([x2, x1], dim=1) fused: x2 channels first)
    s1, t1 = _fold_bn(params["b1"], params["gamma1"], params["beta1"],
                      params["mean1"], params["var1"])
    w1p = jnp.pad(params["w1"], ((0, 0), (0, 0), (0, 0), (0, pad_o)))
    y = conv3x3_bn_relu([x2, x1u], w1p,
                        jnp.pad(s1, (0, pad_o)), jnp.pad(t1, (0, pad_o)))

    # conv2 + bn2 + relu  (input channels padded to cp with zero weights)
    s2, t2 = _fold_bn(params["b2"], params["gamma2"], params["beta2"],
                      params["mean2"], params["var2"])
    w2p = jnp.pad(params["w2"], ((0, 0), (0, 0), (0, pad_o), (0, pad_o)))
    y = conv3x3_bn_relu([y], w2p,
                        jnp.pad(s2, (0, pad_o)), jnp.pad(t2, (0, pad_o)))

    y = y[..., :cout]
    return jnp.transpose(y, (0, 3, 1, 2))               # NHWC -> NCHW


# pure-JAX reference (no Pallas) for correctness check
def up_forward_ref(params, x1_nchw, x2_nchw):
    x1 = jnp.transpose(x1_nchw, (0, 2, 3, 1))
    x2 = jnp.transpose(x2_nchw, (0, 2, 3, 1))
    B, H, W, C = x1.shape
    uh = jnp.asarray(_bilinear_matrix(H, 2 * H))
    uw = jnp.asarray(_bilinear_matrix(W, 2 * W))
    x1u = jnp.einsum("Oh,Pw,bhwc->bOPc", uh, uw, x1)
    x = jnp.concatenate([x2, x1u], axis=-1)

    def conv(x, w, scale, shift):
        y = jax.lax.conv_general_dilated(
            x, w, (1, 1), "SAME",
            dimension_numbers=("NHWC", "HWIO", "NHWC"))
        return jnp.maximum(y * scale + shift, 0.0)

    s1, t1 = _fold_bn(params["b1"], params["gamma1"], params["beta1"],
                      params["mean1"], params["var1"])
    x = conv(x, params["w1"], s1, t1)
    s2, t2 = _fold_bn(params["b2"], params["gamma2"], params["beta2"],
                      params["mean2"], params["var2"])
    x = conv(x, params["w2"], s2, t2)
    return jnp.transpose(x, (0, 3, 1, 2))


if __name__ == "__main__":
    key = jax.random.PRNGKey(0)
    kx1, kx2, kp = jax.random.split(key, 3)

    B, C1, C2 = 2, 4, 4          # x1 channels, x2 channels
    H1 = W1 = 8                  # x1 spatial; x2 is 2x
    in_ch, out_ch = C1 + C2, 4

    x1 = jax.random.normal(kx1, (B, C1, H1, W1), jnp.float32)
    x2 = jax.random.normal(kx2, (B, C2, 2 * H1, 2 * W1), jnp.float32)
    params = init_up_params(kp, in_ch, out_ch)

    out = jax.block_until_ready(up_forward(params, x1, x2))
    ref = jax.block_until_ready(up_forward_ref(params, x1, x2))

    assert out.shape == (B, out_ch, 2 * H1, 2 * W1), out.shape
    np.testing.assert_allclose(np.asarray(out), np.asarray(ref),
                               rtol=1e-4, atol=1e-4)
    print("KERNEL_OK")
</pallas_src>

<mosaic_0001>
module attributes {stable_mosaic.version = 11 : i64} {
  func.func @_matmul_rows_kernel(%arg0: i32, %arg1: memref<16x8xf32, #tpu.memory_space<vmem>>, %arg2: memref<1x8x32xf32, #tpu.memory_space<vmem>>, %arg3: memref<1x16x32xf32, #tpu.memory_space<vmem>>) attributes {dimension_semantics = [#tpu.dimension_semantics<parallel>], iteration_bounds = array<i64: 2>, scalar_prefetch = 0 : i64, scratch_operands = 0 : i64, tpu.core_type = #tpu.core_type<tc>, window_params = [{pipeline_mode = #tpu.pipeline_mode<synchronous>, transform_indices = @transform_0, window_bounds = array<i64: 16, 8>}, {transform_indices = @transform_1, window_bounds = array<i64: 1, 8, 32>}, {transform_indices = @transform_2, window_bounds = array<i64: 1, 16, 32>}]} {
    %c0 = arith.constant 0 : index
    %c0_0 = arith.constant 0 : index
    %0 = vector.load %arg1[%c0, %c0_0] : memref<16x8xf32, #tpu.memory_space<vmem>>, vector<16x8xf32>
    %c0_1 = arith.constant 0 : index
    %c0_2 = arith.constant 0 : index
    %c0_3 = arith.constant 0 : index
    %1 = vector.load %arg2[%c0_1, %c0_2, %c0_3] : memref<1x8x32xf32, #tpu.memory_space<vmem>>, vector<1x8x32xf32>
    %2 = vector.shape_cast %1 : vector<1x8x32xf32> to vector<8x32xf32>
    %cst = arith.constant dense<0.000000e+00> : vector<16x32xf32>
    %3 = tpu.matmul %0, %2, %cst {dimension_numbers = #tpu.dot_dimension_numbers<[1], [0], [0], [1], [0, 0, 1, 1], [], []>} : vector<16x8xf32>, vector<8x32xf32>, vector<16x32xf32> -> vector<16x32xf32>
    %c0_4 = arith.constant 0 : index
    %c0_5 = arith.constant 0 : index
    %c0_6 = arith.constant 0 : index
    %4 = vector.load %arg3[%c0_4, %c0_5, %c0_6] : memref<1x16x32xf32, #tpu.memory_space<vmem>>, vector<1x16x32xf32>
    %5 = vector.shape_cast %4 : vector<1x16x32xf32> to vector<16x32xf32>
    %6 = vector.shape_cast %3 : vector<16x32xf32> to vector<1x16x32xf32>
    tpu.vector_store %arg3[%c0_4, %c0_5, %c0_6], %6 {strides = array<i32>} : memref<1x16x32xf32, #tpu.memory_space<vmem>>, vector<1x16x32xf32>,
    return
  }
  func.func @transform_0(%arg0: i32) -> (i32, i32) {
    %c0_i32 = arith.constant 0 : i32
    %c0_i32_0 = arith.constant 0 : i32
    %c0_i32_1 = arith.constant 0 : i32
    return %c0_i32, %c0_i32_0 : i32, i32
  }
  func.func @transform_1(%arg0: i32) -> (i32, i32, i32) {
    %c0_i32 = arith.constant 0 : i32
    %c0_i32_0 = arith.constant 0 : i32
    %c0_i32_1 = arith.constant 0 : i32
    return %arg0, %c0_i32, %c0_i32_0 : i32, i32, i32
  }
  func.func @transform_2(%arg0: i32) -> (i32, i32, i32) {
    %c0_i32 = arith.constant 0 : i32
    %c0_i32_0 = arith.constant 0 : i32
    %c0_i32_1 = arith.constant 0 : i32
    return %arg0, %c0_i32, %c0_i32_0 : i32, i32, i32
  }
}

</mosaic_0001>

<llo_original>
// kernel: tpu_custom_call.1
$region0: #{tpu_custom_call.1}
  #allocation0 [shape = 'u32[]', space=smem, size = 0x4, offset = 0x4, fixed_abs, tag = 'smem constant byte address 0x4 - core index']
  #allocation1 [shape = 'u32[144,128]{1,0:T(1,128)}', space=vmem, size = 0x12000, scoped, tag = 'internal scratch']
  %s0 = inlined_call_operand.vmem [shape: f32[16,8], index: 0, kind: input, shape index: {}]
  %s1 = inlined_call_operand.vmem [shape: f32[2,8,32], index: 1, kind: input, shape index: {}]
  %s2 = inlined_call_operand.hbm [shape: f32[2,16,32], index: 2, kind: output, shape index: {}]
  %s3 = sld [smem:[#allocation0]]
  $region41: #{tpu_custom_call.1} parent=0
    _
  %s5 = ssub.s32 1, %s3
  %s6 = scalar_select 0, %s5, %s3
  $region1: #{tpu_custom_call.1} parent=0
    #allocation2 [shape = 'u8[16384]{0}', space=vmem, size = 0x4000, scoped, tag = 'output window, operand 0']
    #allocation3 [shape = 's32[2]{0}', space=sflag, size = 0x8, scoped, tag = 'scoped memory for tpu_custom_call.1']
    %7 = vsyncpa [#allocation3], 0
    %s8 = scalar_lea.sflag [#allocation3], 1
    %9 = vsyncpa %s8, 0
    loop: start=0, step=1, limit=4
    $region2: #{tpu_custom_call.1} parent=1 // loop_pre_header
      _
    $region3: #{tpu_custom_call.1} parent=1 // loop_header
      %s11 = sphi 0, %s15
      %p12 = scmp.ge.s32.totalorder %s11, 4
      %s19 = sphi 0, %s19
      %s21 = sphi 0, %s19
      %s22 = sphi 0, %s21
      %s36 = sphi 0, %s22
      %s42 = sphi 0, %s44
      %s45 = sphi 0, %s42
      %s46 = sphi 0, %s45
      %s62 = sphi 0, %s46
      %s68 = sphi 0, %s70
      %s71 = sphi 0, %s68
      %s72 = sphi 0, %s71
      %s88 = sphi 0, %s72
    $region4: #{tpu_custom_call.1} parent=1 // loop_header_branch
      %14 = sbr.rel (%p12) target = $region8
    $region5: #{tpu_custom_call.1} parent=1 // loop_body
      %s16 = ssub.s32 %s11, 1
      %s17 = ssub.s32 %s11, 2
      %s18 = sadd.s32 %s11, 1
      %s20 = sadd.s32 %s19, 1
      %p23 = scmp.eq.s32.totalorder %s11, 1
      %p24 = scmp.ne.s32.totalorder %s19, %s21
      %p25 = scmp.eq.s32.totalorder %s11, 0
      %p26 = por %p24, %p25
      %p27 = scmp.ne.s32.totalorder %s19, %s21
      %p28 = scmp.eq.s32.totalorder %s16, 1
      %p29 = por %p27, %p28
      %p30 = scmp.ne.s32.totalorder %s21, %s22
      %p31 = scmp.eq.s32.totalorder %s16, 0
      %p32 = por %p30, %p31
      %p33 = scmp.ne.s32.totalorder %s21, %s22
      %p34 = scmp.eq.s32.totalorder %s17, 1
      %p35 = por %p33, %p34
      %p37 = scmp.ne.s32.totalorder %s22, %s36
      %p38 = scmp.eq.s32.totalorder %s17, 0
      %p39 = por %p37, %p38
      %s40 = ssub.s32 %s11, %s18
      %p41 = scmp.eq.s32.totalorder %s40, 0
      %s43 = sadd.s32 %s42, 1
      %s44 = scalar_select %p41, %s42, %s43
      %p47 = pneg %p41
      %p48 = scmp.eq.s32.totalorder %s11, 1
      %p49 = por %p47, %p48
      %p50 = scmp.ne.s32.totalorder %s42, %s45
      %p51 = scmp.eq.s32.totalorder %s11, 0
      %p52 = por %p50, %p51
      %p53 = scmp.ne.s32.totalorder %s42, %s45
      %p54 = scmp.eq.s32.totalorder %s16, 1
      %p55 = por %p53, %p54
      %p56 = scmp.ne.s32.totalorder %s45, %s46
      %p57 = scmp.eq.s32.totalorder %s16, 0
      %p58 = por %p56, %p57
      %p59 = scmp.ne.s32.totalorder %s45, %s46
      %p60 = scmp.eq.s32.totalorder %s17, 1
      %p61 = por %p59, %p60
      %p63 = scmp.ne.s32.totalorder %s46, %s62
      %p64 = scmp.eq.s32.totalorder %s17, 0
      %p65 = por %p63, %p64
      %s66 = ssub.s32 %s11, %s18
      %p67 = scmp.eq.s32.totalorder %s66, 0
      %s69 = sadd.s32 %s68, 1
      %s70 = scalar_select %p67, %s68, %s69
      %p73 = pneg %p67
      %p74 = scmp.eq.s32.totalorder %s11, 1
      %p75 = por %p73, %p74
      %p76 = scmp.ne.s32.totalorder %s68, %s71
      %p77 = scmp.eq.s32.totalorder %s11, 0
      %p78 = por %p76, %p77
      %p79 = scmp.ne.s32.totalorder %s68, %s71
      %p80 = scmp.eq.s32.totalorder %s16, 1
      %p81 = por %p79, %p80
      %p82 = scmp.ne.s32.totalorder %s71, %s72
      %p83 = scmp.eq.s32.totalorder %s16, 0
      %p84 = por %p82, %p83
      %p85 = scmp.ne.s32.totalorder %s71, %s72
      %p86 = scmp.eq.s32.totalorder %s17, 1
      %p87 = por %p85, %p86
      %p89 = scmp.ne.s32.totalorder %s72, %s88
      %p90 = scmp.eq.s32.totalorder %s17, 0
      %p91 = por %p89, %p90
      %p92 = scmp.le.s32.totalorder 1, %s11
      %p93 = scmp.lt.s32.totalorder %s11, 3
      %p94 = pnand %p92, %p93
      %p95 = pneg %p94
      // Predicated region
      $region9: #{tpu_custom_call.1} parent=5 // pred_check
        _
      $region10: #{tpu_custom_call.1} parent=5 // pred_check_branch
        %97 = sbr.rel (%p94) target = $region12
      $region11: #{tpu_custom_call.1} parent=5 // pred_region
        %s98 = ssub.s32 %s11, 1
        // Predicated region
        $region13: #{tpu_custom_call.1} parent=11 // pred_check
          %p99 = pneg %p32
        $region14: #{tpu_custom_call.1} parent=11 // pred_check_branch
          %101 = sbr.rel (%p99) target = $region16
        $region15: #{tpu_custom_call.1} parent=11 // pred_region
          _
        $region16: #{tpu_custom_call.1} parent=11 // pred_fallthru
          _
      $region12: #{tpu_custom_call.1} parent=5 // pred_fallthru
        _
      %p102 = scmp.lt.s32.totalorder %s11, 2
      // Predicated region
      $region17: #{tpu_custom_call.1} parent=5 // pred_check
        %p103 = pneg %p102
      $region18: #{tpu_custom_call.1} parent=5 // pred_check_branch
        %105 = sbr.rel (%p103) target = $region20
      $region19: #{tpu_custom_call.1} parent=5 // pred_region
        // Predicated region
        $region21: #{tpu_custom_call.1} parent=19 // pred_check
          %p106 = pneg %p52
        $region22: #{tpu_custom_call.1} parent=19 // pred_check_branch
          %108 = sbr.rel (%p106) target = $region24
        $region23: #{tpu_custom_call.1} parent=19 // pred_region
          %p109 = scmp.lt.s32.totalorder %s11, 1
          %s110 = scalar_select %p109, %s11, 1
          %s111 = smul.addr %s110, 8
          %s112 = scalar_lea.vmem %s1, %s111
        $region24: #{tpu_custom_call.1} parent=19 // pred_fallthru
          _
      $region20: #{tpu_custom_call.1} parent=5 // pred_fallthru
        _
      %p113 = scmp.le.s32.totalorder 1, %s11
      %p114 = scmp.lt.s32.totalorder %s11, 3
      %p115 = pnand %p113, %p114
      %p116 = pneg %p115
      // Predicated region
      $region25: #{tpu_custom_call.1} parent=5 // pred_check
        _
      $region26: #{tpu_custom_call.1} parent=5 // pred_check_branch
        %118 = sbr.rel (%p115) target = $region28
      $region27: #{tpu_custom_call.1} parent=5 // pred_region
        %s119 = ssub.s32 %s11, 1
        %p120 = pneg %p32
        %p121 = pneg %p29
        %p122 = scmp.lt.s32.totalorder %s16, 1
        %s123 = scalar_select %p122, %s16, 1
        %s124 = smul.addr %s123, 8
        %s125 = scalar_lea.vmem %s1, %s124
        %p126 = pneg %p58
        %p127 = pneg %p55
        %p128 = pneg %p84
        %p129 = pneg %p81
        %s130 = sand.u32 %s71, 1
        %s131 = scalar_lea.sflag [#allocation3], %s130
        %s132 = sand.u32 %s71, 1
        %s133 = smul.addr %s132, 16
        %s134 = scalar_lea.vmem [#allocation2], %s133
        %p135 = scmp.lt.s32.totalorder %s16, 1
        %s136 = scalar_select %p135, %s16, 1
        %s137 = smul.addr %s136, 8
        %s138 = scalar_lea.vmem %s1, %s137
        %v139 = vld [vmem:[%s0] sm:$0xff]
        %v140 = vld [vmem:[%s0 + $0x8] sm:$0xff]
        %v141 = vld [vmem:[%s138] sm:$0xff]
        %vm142 = vcmask 64512
        %v144 = vsel %vm142, %v139, 0
        %v147 = vsel %vm142, %v140, 0
        %149 = vmatprep.subr.mxu0 0.0
        %150 = vmatpush1.msra.mxu0 %v141
        %151 = vmatprep.subr.mxu0 0.0
        %152 = vmatpush1.msra.mxu0 0.0
        %153 = vmatprep.subr.mxu0 0.0
        %154 = vmatpush1.msra.mxu0 0.0
        %155 = vmatprep.subr.mxu0 0.0
        %156 = vmatpush1.msra.mxu0 0.0
        %157 = vmatprep.subr.mxu0 0.0
        %158 = vmatpush1.msra.mxu0 0.0
        %159 = vmatprep.subr.mxu0 0.0
        %160 = vmatpush1.msra.mxu0 0.0
        %161 = vmatprep.subr.mxu0 0.0
        %162 = vmatpush1.msra.mxu0 0.0
        %163 = vmatprep.subr.mxu0 0.0
        %164 = vmatpush1.msra.mxu0 0.0
        %165 = vmatprep.subr.mxu0 0.0
        %166 = vmatpush1.msra.mxu0 0.0
        %167 = vmatprep.subr.mxu0 0.0
        %168 = vmatpush1.msra.mxu0 0.0
        %169 = vmatprep.subr.mxu0 0.0
        %170 = vmatpush1.msra.mxu0 0.0
        %171 = vmatprep.subr.mxu0 0.0
        %172 = vmatpush1.msra.mxu0 0.0
        %173 = vmatprep.subr.mxu0 0.0
        %174 = vmatpush1.msra.mxu0 0.0
        %175 = vmatprep.subr.mxu0 0.0
        %176 = vmatpush1.msra.mxu0 0.0
        %177 = vmatprep.subr.mxu0 0.0
        %178 = vmatpush1.msra.mxu0 0.0
        %179 = vmatprep.subr.mxu0 0.0
        %180 = vmatpush1.msra.mxu0 0.0
        %181 = vmatprep.subr.mxu0 0.0
        %182 = vmatpush1.msra.mxu0 0.0
        %183 = vmatprep.subr.mxu0 0.0
        %184 = vmatpush1.msra.mxu0 0.0
        %185 = vmatprep.subr.mxu0 0.0
        %186 = vmatpush1.msra.mxu0 0.0
        %187 = vmatprep.subr.mxu0 0.0
        %188 = vmatpush1.msra.mxu0 0.0
        %189 = vmatprep.subr.mxu0 0.0
        %190 = vmatpush1.msra.mxu0 0.0
        %191 = vmatprep.subr.mxu0 0.0
        %192 = vmatpush1.msra.mxu0 0.0
        %193 = vmatprep.subr.mxu0 0.0
        %194 = vmatpush1.msra.mxu0 0.0
        %195 = vmatprep.subr.mxu0 0.0
        %196 = vmatpush1.msra.mxu0 0.0
        %197 = vmatprep.subr.mxu0 0.0
        %198 = vmatpush1.msra.mxu0 0.0
        %199 = vmatprep.subr.mxu0 0.0
        %200 = vmatpush1.msra.mxu0 0.0
        %201 = vmatprep.subr.mxu0 0.0
        %202 = vmatpush1.msra.mxu0 0.0
        %203 = vmatprep.subr.mxu0 0.0
        %204 = vmatpush1.msra.mxu0 0.0
        %205 = vmatprep.subr.mxu0 0.0
        %206 = vmatpush1.msra.mxu0 0.0
        %207 = vmatprep.subr.mxu0 0.0
        %208 = vmatpush1.msra.mxu0 0.0
        %209 = vmatprep.subr.mxu0 0.0
        %210 = vmatpush1.msra.mxu0 0.0
        %211 = vmatprep.subr.mxu0 0.0
        %212 = vmatpush1.msra.mxu0 0.0
        %213 = vmatprep.mubr.f32.mxu0 0.0
        %214 = vmatmul.mubr.f32.gmra.mrb[0].mxu0 %v144
        %v215 = vpop.f32.mrb[0].mxu0
        %v216 = vadd.f32 0.0, %v215
        %v217 = vpop.f32.mrb[0].mxu0
        %218 = vmatprep.mubr.f32.mxu0 0.0
        %219 = vmatmul.mubr.f32.gmra.mrb[0].mxu0 %v147
        %v220 = vpop.f32.mrb[0].mxu0
        %v221 = vadd.f32 0.0, %v220
        %v222 = vpop.f32.mrb[0].mxu0
        %223 = vdwg.mxu0
        %vm224 = vcmask 261120
        %225 = vst.msk [vmem:[%s134] sm:$0xff] %vm224, %v216
        %226 = vst.msk [vmem:[%s134 + $0x8] sm:$0xff] %vm224, %v221
        %s227 = sand.u32 %s71, 1
        %s228 = scalar_lea.sflag [#allocation3], %s227
        %s229 = sand.u32 %s71, 1
        %s230 = smul.addr %s229, 16
        %s231 = scalar_lea.vmem [#allocation2], %s230
        // Predicated region
        $region29: #{tpu_custom_call.1} parent=27 // pred_check
          %p232 = pneg %p81
        $region30: #{tpu_custom_call.1} parent=27 // pred_check_branch
          %234 = sbr.rel (%p232) target = $region32
        $region31: #{tpu_custom_call.1} parent=27 // pred_region
          %s236 = ssub.s32 256, 256
          %237 = vsyncadd %s228, %s236
          %s238 = smul.addr %s16, 2
          %s239 = smul.addr %s238, 128
          %s240 = scalar_lea.hbm %s2, %s239
          %s241 = sshll.u32 %s231, 4
          %s242 = int_to_ptr.vmem [resolvable:$true] %s241
          %247 = dma.vmem_to_hbm [thread:$0]  %s242, 256, %s240, %s228, 128, 128, 8
        $region32: #{tpu_custom_call.1} parent=27 // pred_fallthru
          _
      $region28: #{tpu_custom_call.1} parent=5 // pred_fallthru
        _
      %p248 = scmp.le.s32.totalorder 2, %s11
      // Predicated region
      $region33: #{tpu_custom_call.1} parent=5 // pred_check
        %p249 = pneg %p248
      $region34: #{tpu_custom_call.1} parent=5 // pred_check_branch
        %251 = sbr.rel (%p249) target = $region36
      $region35: #{tpu_custom_call.1} parent=5 // pred_region
        %s252 = ssub.s32 %s11, 2
        // Predicated region
        $region37: #{tpu_custom_call.1} parent=35 // pred_check
          %p253 = pneg %p87
        $region38: #{tpu_custom_call.1} parent=35 // pred_check_branch
          %255 = sbr.rel (%p253) target = $region40
        $region39: #{tpu_custom_call.1} parent=35 // pred_region
          %s256 = sand.u32 %s72, 1
          %s257 = scalar_lea.sflag [#allocation3], %s256
          %s258 = sand.u32 %s72, 1
          %s259 = smul.addr %s258, 16
          %s260 = scalar_lea.vmem [#allocation2], %s259
          %261 = dma.done %s257, 256
        $region40: #{tpu_custom_call.1} parent=35 // pred_fallthru
          _
      $region36: #{tpu_custom_call.1} parent=5 // pred_fallthru
        _
    $region6: #{tpu_custom_call.1} parent=1 // loop_footer
      %s15 = sadd.s32 1, %s11
    $region7: #{tpu_custom_call.1} parent=1 // loop_footer_branch
      %10 = sbr.rel target = $region3
    $region8: #{tpu_custom_call.1} parent=1 // loop_exit
      _
    %262 = vsyncpa [#allocation3], 1
    %s263 = scalar_lea.sflag [#allocation3], 1
    %264 = vsyncpa %s263, 1

</llo_original>
